<compile_context>
chip_gen: v7x
topology: tpu7x:2x2x1
jax: 0.10.0
libtpu: 0.0.40
codegen_flags: <defaults>
</compile_context>

<pallas_src>
import jax
import jax.numpy as jnp
from jax.experimental import pallas as pl
from jax.experimental.pallas import tpu as pltpu

_TARGET_BLOCK_BYTES = 4 * 1024 * 1024   # ~4 MiB output block: 2x-buffered fits v5e's 16 MiB default
_MIN_BLOCK_BYTES = 512 * 1024           # don't shrink blocks below ~0.5 MiB (per-step overhead)
_MIN_GRID_STEPS = 4                     # aim for >=4 pipelined steps when batch/row allow
_VMEM_LIMIT_BYTES = 32 * 1024 * 1024    # raise v5e's 16 MiB scoped default; safe on all gens


def _cdiv(a, b):
    return -(-a // b)


def _pos_embed_kernel(pe_ref, out_ref):
    # pe_ref : (1, rt)   -- one lane-chunk of the flattened positional rows
    # out_ref: (bt, rt)  -- output chunk for bt batch elements
    # (A stride-0 sublane-broadcast read would avoid the broadcast_in_dim, but the
    #  kernel is DMA-bound and broadcast_to is the known-good lowering.)
    out_ref[...] = jnp.broadcast_to(pe_ref[...], out_ref.shape)


def _choose_tiles(batch, row, itemsize):
    """Pick (batch_tile, row_tile) for the (batch, row) flat output.

    Targets ~0.5-4 MiB per output block, >= _MIN_GRID_STEPS total grid steps when
    possible, and respects the (8, 128) block-shape rule (or full-dim blocks).
    """
    total_bytes = batch * row * itemsize
    block_target = min(_TARGET_BLOCK_BYTES,
                       max(_MIN_BLOCK_BYTES, total_bytes // _MIN_GRID_STEPS))

    # Row (lane) tile: full row if a minimal batch chunk fits the block target,
    # otherwise chunk the row in multiples of 128 lanes (unmasked-vst friendly).
    min_bt = batch if batch < 8 else 8
    if row * itemsize * min_bt <= block_target:
        rt = row
    else:
        rt = (block_target // (min_bt * itemsize) // 128) * 128
        rt = max(128, min(rt, row))

    rt_bytes = rt * itemsize
    row_steps = _cdiv(row, rt)

    # Batch (sublane) tile: fill the block target, but cap it so the total grid has
    # at least _MIN_GRID_STEPS steps when the batch allows.
    bt = max(1, block_target // rt_bytes)
    bt = min(bt, batch)
    need_batch_steps = _cdiv(_MIN_GRID_STEPS, row_steps)
    bt = min(bt, _cdiv(batch, need_batch_steps))
    if bt != batch:
        # block-shape rule: sublane dim multiple of 8 unless it equals the full dim
        bt = max(8, (bt // 8) * 8)
        bt = min(bt, batch)
    return bt, rt


def positional_embedding(x, pe_weight):
    """x: (B, S) int tokens (only its shape is used). pe_weight: (max_len, d_model)."""
    batch, seq_len = x.shape
    max_len, d_model = pe_weight.shape
    assert seq_len <= max_len

    row = seq_len * d_model
    itemsize = pe_weight.dtype.itemsize

    # Layout plumbing in the wrapper (tiny, S*D elements): read only the rows that
    # are actually used and flatten to a single lane-dense row.
    pe_row = pe_weight[:seq_len].reshape(1, row)

    bt, rt = _choose_tiles(batch, row, itemsize)
    grid = (_cdiv(row, rt), _cdiv(batch, bt))  # (row-chunk j, batch-chunk i); the tiny
    # pe chunk stays resident across the inner batch sweep.

    out_flat = pl.pallas_call(
        _pos_embed_kernel,
        out_shape=jax.ShapeDtypeStruct((batch, row), pe_weight.dtype),
        grid_spec=pltpu.PrefetchScalarGridSpec(
            num_scalar_prefetch=0,
            grid=grid,
            in_specs=[
                pl.BlockSpec((1, rt), lambda j, i: (0, j)),
            ],
            out_specs=pl.BlockSpec((bt, rt), lambda j, i: (i, j)),
        ),
        compiler_params=pltpu.CompilerParams(
            # No reduction axes: both axes parallel (v7x megacore split; neutral on
            # single-TC v5e/v6e).
            dimension_semantics=("parallel", "parallel"),
            vmem_limit_bytes=_VMEM_LIMIT_BYTES,
        ),
    )(pe_row)

    return out_flat.reshape(batch, seq_len, d_model)


if __name__ == "__main__":
    key = jax.random.PRNGKey(0)
    k_tok, k_pe, k_tok2, k_pe2 = jax.random.split(key, 4)

    # Case 1: small shapes consistent with the module: batch=2, seq=8, max_len=16, d_model=32
    batch, seq_len = 2, 8
    max_len, d_model = 16, 32
    x = jax.random.randint(k_tok, (batch, seq_len), 0, 100, dtype=jnp.int32)
    pe_weight = jax.random.normal(k_pe, (max_len, d_model), dtype=jnp.float32)

    out = positional_embedding(x, pe_weight)
    out = jax.block_until_ready(out)
    ref = jnp.broadcast_to(pe_weight[:seq_len][None], (batch, seq_len, d_model))
    assert out.shape == (batch, seq_len, d_model)
    assert out.dtype == jnp.float32
    assert jnp.allclose(out, ref)

    # Case 2: slightly larger batch so the grid actually has multiple batch chunks.
    batch2, seq_len2 = 16, 8
    max_len2, d_model2 = 16, 128
    x2 = jax.random.randint(k_tok2, (batch2, seq_len2), 0, 100, dtype=jnp.int32)
    pe_weight2 = jax.random.normal(k_pe2, (max_len2, d_model2), dtype=jnp.float32)

    out2 = positional_embedding(x2, pe_weight2)
    out2 = jax.block_until_ready(out2)
    ref2 = jnp.broadcast_to(pe_weight2[:seq_len2][None], (batch2, seq_len2, d_model2))
    assert out2.shape == (batch2, seq_len2, d_model2)
    assert jnp.allclose(out2, ref2)

    print("KERNEL_OK")
</pallas_src>

<mosaic_0001>
module attributes {stable_mosaic.version = 11 : i64} {
  func.func @_pos_embed_kernel(%arg0: i32, %arg1: i32, %arg2: memref<1x256xf32, #tpu.memory_space<vmem>>, %arg3: memref<2x256xf32, #tpu.memory_space<vmem>>) attributes {dimension_semantics = [#tpu.dimension_semantics<parallel>, #tpu.dimension_semantics<parallel>], iteration_bounds = array<i64: 1, 1>, scalar_prefetch = 0 : i64, scratch_operands = 0 : i64, tpu.core_type = #tpu.core_type<tc>, window_params = [{transform_indices = @transform_0, window_bounds = array<i64: 1, 256>}, {transform_indices = @transform_1, window_bounds = array<i64: 2, 256>}]} {
    %c0 = arith.constant 0 : index
    %c0_0 = arith.constant 0 : index
    %0 = vector.load %arg2[%c0, %c0_0] : memref<1x256xf32, #tpu.memory_space<vmem>>, vector<1x256xf32>
    %1 = vector.shape_cast %0 : vector<1x256xf32> to vector<1x256xf32>
    %2 = vector.broadcast %1 : vector<1x256xf32> to vector<2x256xf32>
    %c0_1 = arith.constant 0 : index
    %c0_2 = arith.constant 0 : index
    %3 = vector.load %arg3[%c0_1, %c0_2] : memref<2x256xf32, #tpu.memory_space<vmem>>, vector<2x256xf32>
    tpu.vector_store %arg3[%c0_1, %c0_2], %2 {strides = array<i32>} : memref<2x256xf32, #tpu.memory_space<vmem>>, vector<2x256xf32>,
    return
  }
  func.func @transform_0(%arg0: i32, %arg1: i32) -> (i32, i32) {
    %c0_i32 = arith.constant 0 : i32
    %c0_i32_0 = arith.constant 0 : i32
    return %c0_i32, %arg0 : i32, i32
  }
  func.func @transform_1(%arg0: i32, %arg1: i32) -> (i32, i32) {
    %c0_i32 = arith.constant 0 : i32
    return %arg1, %arg0 : i32, i32
  }
}

</mosaic_0001>

<llo_original>
// kernel: tpu_custom_call.1
$region0: #{tpu_custom_call.1}
  #allocation0 [shape = 'u32[]', space=smem, size = 0x4, offset = 0x4, fixed_abs, tag = 'smem constant byte address 0x4 - core index']
  #allocation1 [shape = 'u32[144,128]{1,0:T(1,128)}', space=vmem, size = 0x12000, scoped, tag = 'internal scratch']
  %s0 = inlined_call_operand.hbm [shape: f32[1,256], index: 0, kind: input, shape index: {}]
  %s1 = inlined_call_operand.hbm [shape: f32[2,256], index: 1, kind: output, shape index: {}]
  %s2 = sld [smem:[#allocation0]]
  $region18: #{tpu_custom_call.1} parent=0
    _
  %s4 = ssub.s32 1, %s2
  %s5 = scalar_select 0, %s4, %s2
  $region1: #{tpu_custom_call.1} parent=0
    #allocation2 [shape = 'u8[1024]{0}', space=vmem, size = 0x400, scoped, tag = 'input window, operand 0, single buffered']
    #allocation3 [shape = 's32[1]{0}', space=sflag, size = 0x4, scoped, tag = 'scoped memory for tpu_custom_call.1']
    #allocation4 [shape = 's32[1]{0}', space=sflag, size = 0x4, scoped, tag = 'scoped memory for tpu_custom_call.1']
    #allocation5 [shape = 'u8[2048]{0}', space=vmem, size = 0x800, scoped, tag = 'output window, operand 0, single buffered']
    %6 = vsyncpa [#allocation3], 0
    %7 = vsyncpa [#allocation4], 0
    // Predicated region
    $region2: #{tpu_custom_call.1} parent=1 // pred_check
      _
    $region3: #{tpu_custom_call.1} parent=1 // pred_check_branch
      %9 = sbr.rel (0) target = $region5
    $region4: #{tpu_custom_call.1} parent=1 // pred_region
      %s11 = ssub.s32 32, 32
      %12 = vsyncadd [#allocation3], %s11
      %s14 = sshll.u32 [#allocation2], 4
      %s15 = int_to_ptr.vmem [resolvable:$true] %s14
      %17 = dma.hbm_to_vmem [thread:$0]  %s0, 32, %s15, [#allocation3]
    $region5: #{tpu_custom_call.1} parent=1 // pred_fallthru
      _
    // Predicated region
    $region6: #{tpu_custom_call.1} parent=1 // pred_check
      _
    $region7: #{tpu_custom_call.1} parent=1 // pred_check_branch
      %19 = sbr.rel (0) target = $region9
    $region8: #{tpu_custom_call.1} parent=1 // pred_region
      %20 = dma.done [#allocation3], 32
    $region9: #{tpu_custom_call.1} parent=1 // pred_fallthru
      _
    %v21 = vld [vmem:[#allocation2] sm:$0x3]
    %v23 = vlaneseq
    %v24 = vshrl.u32 %v23, 7
    %v25 = vsub.s32 0, %v24
    %v26 = vrot.slane %v21, %v25
    %v27 = vlaneseq
    %v28 = vshrl.u32 %v27, 7
    %v29 = vsub.s32 1, %v28
    %v30 = vrot.slane %v21, %v29
    %v31 = vcombine.low %v26, %v30
    %v33 = vunpack.c.l.s4 1983009808
    %v34 = vunpack.c.0.s8 %v33
    %v35 = vlaneseq
    %v36 = vshrl.u32 %v35, 7
    %v37 = vsub.s32 %v34, %v36
    %v38 = vrot.slane %v31, %v37
    %40 = vst [vmem:[#allocation5] sm:$0xf] %v38
    // Predicated region
    $region10: #{tpu_custom_call.1} parent=1 // pred_check
      _
    $region11: #{tpu_custom_call.1} parent=1 // pred_check_branch
      %42 = sbr.rel (0) target = $region13
    $region12: #{tpu_custom_call.1} parent=1 // pred_region
      %s44 = ssub.s32 64, 64
      %45 = vsyncadd [#allocation4], %s44
      %s47 = sshll.u32 [#allocation5], 4
      %s48 = int_to_ptr.vmem [resolvable:$true] %s47
      %50 = dma.vmem_to_hbm [thread:$0]  %s48, 64, %s1, [#allocation4]
    $region13: #{tpu_custom_call.1} parent=1 // pred_fallthru
      _
    // Predicated region
    $region14: #{tpu_custom_call.1} parent=1 // pred_check
      _
    $region15: #{tpu_custom_call.1} parent=1 // pred_check_branch
      %52 = sbr.rel (0) target = $region17
    $region16: #{tpu_custom_call.1} parent=1 // pred_region
      %53 = dma.done [#allocation4], 64
    $region17: #{tpu_custom_call.1} parent=1 // pred_fallthru
      _
    %54 = vsyncpa [#allocation3], 1
    %55 = vsyncpa [#allocation4], 1

</llo_original>
